<compile_context>
chip_gen: v6e
topology: v6e:2x2x1
jax: 0.10.0
libtpu: 0.0.40
codegen_flags: <defaults>
</compile_context>

<pallas_src>
import math

import jax
import jax.numpy as jnp
from jax.experimental import pallas as pl
from jax.experimental.pallas import tpu as pltpu

Z_DIM = 64
HIDDEN = 256
IMG_DIM = 256   # lane-dense (multiple of 128) synthetic image dim (e.g. 16x16)
BATCH = 256     # batch many z vectors per call (amortizes launch + weight DMA)
TILE_B = 128    # batch tile per grid step (2 tiles -> both TCs on v7x)


def generator_kernel(x_ref, w1_ref, b1_ref, w2_ref, b2_ref, o_ref):
    # ---- Linear(z_dim, 256): bf16 x bf16 on the MXU, f32 accumulate ----
    h = jnp.dot(x_ref[...], w1_ref[...],
                preferred_element_type=jnp.float32) + b1_ref[...]
    # ---- LeakyReLU(0.01): one VPU max (identical to where() for slope < 1) ----
    h = jnp.maximum(h, 0.01 * h)
    # ---- Linear(256, img_dim): cast MXU input to bf16, keep f32 accumulate ----
    y = jnp.dot(h.astype(jnp.bfloat16), w2_ref[...],
                preferred_element_type=jnp.float32) + b2_ref[...]
    # ---- Tanh in f32 (EUP) ----
    o_ref[...] = jnp.tanh(y).astype(o_ref.dtype)


def generator_forward(x, w1, b1, w2, b2, *, tile_b=TILE_B):
    B, K = x.shape
    H = w1.shape[1]
    N = w2.shape[1]
    tile_b = min(tile_b, B)
    grid = (pl.cdiv(B, tile_b),)
    return pl.pallas_call(
        generator_kernel,
        out_shape=jax.ShapeDtypeStruct((B, N), jnp.float32),
        grid_spec=pltpu.PrefetchScalarGridSpec(
            num_scalar_prefetch=0,
            grid=grid,
            in_specs=[
                # activation tile: streamed / double-buffered over the grid
                pl.BlockSpec((tile_b, K), lambda i: (i, 0)),
                # weights + biases: constant block index -> VMEM-resident
                pl.BlockSpec((K, H), lambda i: (0, 0)),
                pl.BlockSpec((1, H), lambda i: (0, 0)),
                pl.BlockSpec((H, N), lambda i: (0, 0)),
                pl.BlockSpec((1, N), lambda i: (0, 0)),
            ],
            out_specs=pl.BlockSpec((tile_b, N), lambda i: (i, 0)),
        ),
        compiler_params=pltpu.CompilerParams(
            dimension_semantics=("parallel",),
        ),
    )(x, w1, b1, w2, b2)


def init_params(key, z_dim, hidden, img_dim):
    """nn.Linear-style U(-1/sqrt(fan_in), 1/sqrt(fan_in)); weights cast to bf16."""
    k1, k2, k3, k4 = jax.random.split(key, 4)
    bound1 = 1.0 / math.sqrt(z_dim)
    bound2 = 1.0 / math.sqrt(hidden)
    # stored as [in, out] (transpose of PyTorch's [out, in]); math is identical.
    w1 = jax.random.uniform(k1, (z_dim, hidden), jnp.float32, -bound1, bound1)
    b1 = jax.random.uniform(k2, (1, hidden), jnp.float32, -bound1, bound1)
    w2 = jax.random.uniform(k3, (hidden, img_dim), jnp.float32, -bound2, bound2)
    b2 = jax.random.uniform(k4, (1, img_dim), jnp.float32, -bound2, bound2)
    return w1.astype(jnp.bfloat16), b1, w2.astype(jnp.bfloat16), b2


def reference_forward(x, w1, b1, w2, b2):
    """Plain-JAX reference mirroring the kernel's dtypes/math."""
    h = jnp.dot(x, w1, preferred_element_type=jnp.float32) + b1
    h = jnp.maximum(h, 0.01 * h)
    y = jnp.dot(h.astype(jnp.bfloat16), w2,
                preferred_element_type=jnp.float32) + b2
    return jnp.tanh(y)


if __name__ == "__main__":
    key = jax.random.PRNGKey(0)
    kx, kp = jax.random.split(key)
    x = jax.random.normal(kx, (BATCH, Z_DIM), jnp.float32).astype(jnp.bfloat16)
    w1, b1, w2, b2 = init_params(kp, Z_DIM, HIDDEN, IMG_DIM)

    out = generator_forward(x, w1, b1, w2, b2)
    out = jax.block_until_ready(out)

    ref = reference_forward(x, w1, b1, w2, b2)
    assert out.shape == (BATCH, IMG_DIM)
    assert out.dtype == jnp.float32
    assert jnp.allclose(out, ref, atol=2e-3, rtol=2e-3)
    print("KERNEL_OK")
</pallas_src>

<mosaic_0001>
module attributes {stable_mosaic.version = 11 : i64} {
  func.func @generator_kernel(%arg0: i32, %arg1: memref<128x64xbf16, #tpu.memory_space<vmem>>, %arg2: memref<64x256xbf16, #tpu.memory_space<vmem>>, %arg3: memref<1x256xf32, #tpu.memory_space<vmem>>, %arg4: memref<256x256xbf16, #tpu.memory_space<vmem>>, %arg5: memref<1x256xf32, #tpu.memory_space<vmem>>, %arg6: memref<128x256xf32, #tpu.memory_space<vmem>>) attributes {dimension_semantics = [#tpu.dimension_semantics<parallel>], iteration_bounds = array<i64: 2>, scalar_prefetch = 0 : i64, scratch_operands = 0 : i64, tpu.core_type = #tpu.core_type<tc>, window_params = [{transform_indices = @transform_0, window_bounds = array<i64: 128, 64>}, {pipeline_mode = #tpu.pipeline_mode<synchronous>, transform_indices = @transform_1, window_bounds = array<i64: 64, 256>}, {pipeline_mode = #tpu.pipeline_mode<synchronous>, transform_indices = @transform_2, window_bounds = array<i64: 1, 256>}, {pipeline_mode = #tpu.pipeline_mode<synchronous>, transform_indices = @transform_3, window_bounds = array<i64: 256, 256>}, {pipeline_mode = #tpu.pipeline_mode<synchronous>, transform_indices = @transform_4, window_bounds = array<i64: 1, 256>}, {transform_indices = @transform_5, window_bounds = array<i64: 128, 256>}]} {
    %c0 = arith.constant 0 : index
    %c0_0 = arith.constant 0 : index
    %0 = vector.load %arg1[%c0, %c0_0] : memref<128x64xbf16, #tpu.memory_space<vmem>>, vector<128x64xbf16>
    %c0_1 = arith.constant 0 : index
    %c0_2 = arith.constant 0 : index
    %1 = vector.load %arg2[%c0_1, %c0_2] : memref<64x256xbf16, #tpu.memory_space<vmem>>, vector<64x256xbf16>
    %cst = arith.constant dense<0.000000e+00> : vector<128x256xf32>
    %2 = tpu.matmul %0, %1, %cst {dimension_numbers = #tpu.dot_dimension_numbers<[1], [0], [0], [1], [0, 0, 1, 1], [], []>} : vector<128x64xbf16>, vector<64x256xbf16>, vector<128x256xf32> -> vector<128x256xf32>
    %c0_3 = arith.constant 0 : index
    %c0_4 = arith.constant 0 : index
    %3 = vector.load %arg3[%c0_3, %c0_4] : memref<1x256xf32, #tpu.memory_space<vmem>>, vector<1x256xf32>
    %4 = vector.broadcast %3 : vector<1x256xf32> to vector<128x256xf32>
    %5 = arith.addf %2, %4 : vector<128x256xf32>
    %cst_5 = arith.constant 0.00999999977 : f32
    %6 = vector.broadcast %cst_5 : f32 to vector<128x256xf32>
    %7 = arith.mulf %6, %5 : vector<128x256xf32>
    %8 = arith.maximumf %5, %7 : vector<128x256xf32>
    %9 = arith.truncf %8 : vector<128x256xf32> to vector<128x256xbf16>
    %c0_6 = arith.constant 0 : index
    %c0_7 = arith.constant 0 : index
    %10 = vector.load %arg4[%c0_6, %c0_7] : memref<256x256xbf16, #tpu.memory_space<vmem>>, vector<256x256xbf16>
    %cst_8 = arith.constant dense<0.000000e+00> : vector<128x256xf32>
    %11 = tpu.matmul %9, %10, %cst_8 {dimension_numbers = #tpu.dot_dimension_numbers<[1], [0], [0], [1], [0, 0, 1, 1], [], []>} : vector<128x256xbf16>, vector<256x256xbf16>, vector<128x256xf32> -> vector<128x256xf32>
    %c0_9 = arith.constant 0 : index
    %c0_10 = arith.constant 0 : index
    %12 = vector.load %arg5[%c0_9, %c0_10] : memref<1x256xf32, #tpu.memory_space<vmem>>, vector<1x256xf32>
    %13 = vector.broadcast %12 : vector<1x256xf32> to vector<128x256xf32>
    %14 = arith.addf %11, %13 : vector<128x256xf32>
    %15 = math.tanh %14 : vector<128x256xf32>
    %c0_11 = arith.constant 0 : index
    %c0_12 = arith.constant 0 : index
    %16 = vector.load %arg6[%c0_11, %c0_12] : memref<128x256xf32, #tpu.memory_space<vmem>>, vector<128x256xf32>
    tpu.vector_store %arg6[%c0_11, %c0_12], %15 {strides = array<i32>} : memref<128x256xf32, #tpu.memory_space<vmem>>, vector<128x256xf32>,
    return
  }
  func.func @transform_0(%arg0: i32) -> (i32, i32) {
    %c0_i32 = arith.constant 0 : i32
    %c0_i32_0 = arith.constant 0 : i32
    return %arg0, %c0_i32 : i32, i32
  }
  func.func @transform_1(%arg0: i32) -> (i32, i32) {
    %c0_i32 = arith.constant 0 : i32
    %c0_i32_0 = arith.constant 0 : i32
    %c0_i32_1 = arith.constant 0 : i32
    return %c0_i32, %c0_i32_0 : i32, i32
  }
  func.func @transform_2(%arg0: i32) -> (i32, i32) {
    %c0_i32 = arith.constant 0 : i32
    %c0_i32_0 = arith.constant 0 : i32
    %c0_i32_1 = arith.constant 0 : i32
    return %c0_i32, %c0_i32_0 : i32, i32
  }
  func.func @transform_3(%arg0: i32) -> (i32, i32) {
    %c0_i32 = arith.constant 0 : i32
    %c0_i32_0 = arith.constant 0 : i32
    %c0_i32_1 = arith.constant 0 : i32
    return %c0_i32, %c0_i32_0 : i32, i32
  }
  func.func @transform_4(%arg0: i32) -> (i32, i32) {
    %c0_i32 = arith.constant 0 : i32
    %c0_i32_0 = arith.constant 0 : i32
    %c0_i32_1 = arith.constant 0 : i32
    return %c0_i32, %c0_i32_0 : i32, i32
  }
  func.func @transform_5(%arg0: i32) -> (i32, i32) {
    %c0_i32 = arith.constant 0 : i32
    %c0_i32_0 = arith.constant 0 : i32
    return %arg0, %c0_i32 : i32, i32
  }
}

</mosaic_0001>

<llo_original>
// kernel: tpu_custom_call.1
$region0: #{tpu_custom_call.1}
  #allocation0 [shape = 'u32[]', space=smem, size = 0x4, offset = 0x4, fixed_abs, tag = 'smem constant byte address 0x4 - core index']
  #allocation1 [shape = 'u32[144,128]{1,0:T(1,128)}', space=vmem, size = 0x12000, scoped, tag = 'internal scratch']
  %s0 = inlined_call_operand.vmem [shape: bf16[256,64], index: 0, kind: input, shape index: {}]
  %s1 = inlined_call_operand.vmem [shape: bf16[64,256], index: 1, kind: input, shape index: {}]
  %s2 = inlined_call_operand.vmem [shape: f32[1,256], index: 2, kind: input, shape index: {}]
  %s3 = inlined_call_operand.hbm [shape: bf16[256,256], index: 3, kind: input, shape index: {}]
  %s4 = inlined_call_operand.vmem [shape: f32[1,256], index: 4, kind: input, shape index: {}]
  %s5 = inlined_call_operand.hbm [shape: f32[256,256], index: 5, kind: output, shape index: {}]
  %s6 = sld [smem:[#allocation0]]
  $region57: #{tpu_custom_call.1} parent=0
    _
  %s8 = ssub.s32 1, %s6
  %s9 = scalar_select 0, %s8, %s6
  $region1: #{tpu_custom_call.1} parent=0
    #allocation2 [shape = 'u8[131072]{0}', space=vmem, size = 0x20000, scoped, tag = 'input window, operand 3, single buffered']
    #allocation3 [shape = 's32[2]{0}', space=sflag, size = 0x8, scoped, tag = 'scoped memory for tpu_custom_call.1']
    #allocation4 [shape = 's32[2]{0}', space=sflag, size = 0x8, scoped, tag = 'scoped memory for tpu_custom_call.1']
    #allocation5 [shape = 'u8[262144]{0}', space=vmem, size = 0x40000, scoped, tag = 'output window, operand 0']
    %10 = vsyncpa [#allocation3], 0
    %11 = vsyncpa [#allocation4], 0
    %s12 = scalar_lea.sflag [#allocation4], 1
    %13 = vsyncpa %s12, 0
    loop: start=0, step=1, limit=4
    $region2: #{tpu_custom_call.1} parent=1 // loop_pre_header
      _
    $region3: #{tpu_custom_call.1} parent=1 // loop_header
      %s15 = sphi 0, %s19
      %p16 = scmp.ge.s32.totalorder %s15, 4
      %s25 = sphi 0, %s27
      %s28 = sphi 0, %s25
      %s29 = sphi 0, %s28
      %s45 = sphi 0, %s29
      %s49 = sphi 0, %s49
      %s51 = sphi 0, %s49
      %s52 = sphi 0, %s51
      %s66 = sphi 0, %s52
      %s70 = sphi 0, %s70
      %s72 = sphi 0, %s70
      %s73 = sphi 0, %s72
      %s87 = sphi 0, %s73
      %s91 = sphi 0, %s91
      %s93 = sphi 0, %s91
      %s94 = sphi 0, %s93
      %s108 = sphi 0, %s94
      %s112 = sphi 0, %s112
      %s114 = sphi 0, %s112
      %s115 = sphi 0, %s114
      %s129 = sphi 0, %s115
      %s135 = sphi 0, %s137
      %s138 = sphi 0, %s135
      %s139 = sphi 0, %s138
      %s155 = sphi 0, %s139
    $region4: #{tpu_custom_call.1} parent=1 // loop_header_branch
      %18 = sbr.rel (%p16) target = $region8
    $region5: #{tpu_custom_call.1} parent=1 // loop_body
      %s20 = ssub.s32 %s15, 1
      %s21 = ssub.s32 %s15, 2
      %s22 = sadd.s32 %s15, 1
      %s23 = ssub.s32 %s15, %s22
      %p24 = scmp.eq.s32.totalorder %s23, 0
      %s26 = sadd.s32 %s25, 1
      %s27 = scalar_select %p24, %s25, %s26
      %p30 = pneg %p24
      %p31 = scmp.eq.s32.totalorder %s15, 1
      %p32 = por %p30, %p31
      %p33 = scmp.ne.s32.totalorder %s25, %s28
      %p34 = scmp.eq.s32.totalorder %s15, 0
      %p35 = por %p33, %p34
      %p36 = scmp.ne.s32.totalorder %s25, %s28
      %p37 = scmp.eq.s32.totalorder %s20, 1
      %p38 = por %p36, %p37
      %p39 = scmp.ne.s32.totalorder %s28, %s29
      %p40 = scmp.eq.s32.totalorder %s20, 0
      %p41 = por %p39, %p40
      %p42 = scmp.ne.s32.totalorder %s28, %s29
      %p43 = scmp.eq.s32.totalorder %s21, 1
      %p44 = por %p42, %p43
      %p46 = scmp.ne.s32.totalorder %s29, %s45
      %p47 = scmp.eq.s32.totalorder %s21, 0
      %p48 = por %p46, %p47
      %s50 = sadd.s32 %s49, 1
      %p53 = scmp.eq.s32.totalorder %s15, 1
      %p54 = scmp.ne.s32.totalorder %s49, %s51
      %p55 = scmp.eq.s32.totalorder %s15, 0
      %p56 = por %p54, %p55
      %p57 = scmp.ne.s32.totalorder %s49, %s51
      %p58 = scmp.eq.s32.totalorder %s20, 1
      %p59 = por %p57, %p58
      %p60 = scmp.ne.s32.totalorder %s51, %s52
      %p61 = scmp.eq.s32.totalorder %s20, 0
      %p62 = por %p60, %p61
      %p63 = scmp.ne.s32.totalorder %s51, %s52
      %p64 = scmp.eq.s32.totalorder %s21, 1
      %p65 = por %p63, %p64
      %p67 = scmp.ne.s32.totalorder %s52, %s66
      %p68 = scmp.eq.s32.totalorder %s21, 0
      %p69 = por %p67, %p68
      %s71 = sadd.s32 %s70, 1
      %p74 = scmp.eq.s32.totalorder %s15, 1
      %p75 = scmp.ne.s32.totalorder %s70, %s72
      %p76 = scmp.eq.s32.totalorder %s15, 0
      %p77 = por %p75, %p76
      %p78 = scmp.ne.s32.totalorder %s70, %s72
      %p79 = scmp.eq.s32.totalorder %s20, 1
      %p80 = por %p78, %p79
      %p81 = scmp.ne.s32.totalorder %s72, %s73
      %p82 = scmp.eq.s32.totalorder %s20, 0
      %p83 = por %p81, %p82
      %p84 = scmp.ne.s32.totalorder %s72, %s73
      %p85 = scmp.eq.s32.totalorder %s21, 1
      %p86 = por %p84, %p85
      %p88 = scmp.ne.s32.totalorder %s73, %s87
      %p89 = scmp.eq.s32.totalorder %s21, 0
      %p90 = por %p88, %p89
      %s92 = sadd.s32 %s91, 1
      %p95 = scmp.eq.s32.totalorder %s15, 1
      %p96 = scmp.ne.s32.totalorder %s91, %s93
      %p97 = scmp.eq.s32.totalorder %s15, 0
      %p98 = por %p96, %p97
      %p99 = scmp.ne.s32.totalorder %s91, %s93
      %p100 = scmp.eq.s32.totalorder %s20, 1
      %p101 = por %p99, %p100
      %p102 = scmp.ne.s32.totalorder %s93, %s94
      %p103 = scmp.eq.s32.totalorder %s20, 0
      %p104 = por %p102, %p103
      %p105 = scmp.ne.s32.totalorder %s93, %s94
      %p106 = scmp.eq.s32.totalorder %s21, 1
      %p107 = por %p105, %p106
      %p109 = scmp.ne.s32.totalorder %s94, %s108
      %p110 = scmp.eq.s32.totalorder %s21, 0
      %p111 = por %p109, %p110
      %s113 = sadd.s32 %s112, 1
      %p116 = scmp.eq.s32.totalorder %s15, 1
      %p117 = scmp.ne.s32.totalorder %s112, %s114
      %p118 = scmp.eq.s32.totalorder %s15, 0
      %p119 = por %p117, %p118
      %p120 = scmp.ne.s32.totalorder %s112, %s114
      %p121 = scmp.eq.s32.totalorder %s20, 1
      %p122 = por %p120, %p121
      %p123 = scmp.ne.s32.totalorder %s114, %s115
      %p124 = scmp.eq.s32.totalorder %s20, 0
      %p125 = por %p123, %p124
      %p126 = scmp.ne.s32.totalorder %s114, %s115
      %p127 = scmp.eq.s32.totalorder %s21, 1
      %p128 = por %p126, %p127
      %p130 = scmp.ne.s32.totalorder %s115, %s129
      %p131 = scmp.eq.s32.totalorder %s21, 0
      %p132 = por %p130, %p131
      %s133 = ssub.s32 %s15, %s22
      %p134 = scmp.eq.s32.totalorder %s133, 0
      %s136 = sadd.s32 %s135, 1
      %s137 = scalar_select %p134, %s135, %s136
      %p140 = pneg %p134
      %p141 = scmp.eq.s32.totalorder %s15, 1
      %p142 = por %p140, %p141
      %p143 = scmp.ne.s32.totalorder %s135, %s138
      %p144 = scmp.eq.s32.totalorder %s15, 0
      %p145 = por %p143, %p144
      %p146 = scmp.ne.s32.totalorder %s135, %s138
      %p147 = scmp.eq.s32.totalorder %s20, 1
      %p148 = por %p146, %p147
      %p149 = scmp.ne.s32.totalorder %s138, %s139
      %p150 = scmp.eq.s32.totalorder %s20, 0
      %p151 = por %p149, %p150
      %p152 = scmp.ne.s32.totalorder %s138, %s139
      %p153 = scmp.eq.s32.totalorder %s21, 1
      %p154 = por %p152, %p153
      %p156 = scmp.ne.s32.totalorder %s139, %s155
      %p157 = scmp.eq.s32.totalorder %s21, 0
      %p158 = por %p156, %p157
      %p159 = scmp.le.s32.totalorder 1, %s15
      %p160 = scmp.lt.s32.totalorder %s15, 3
      %p161 = pnand %p159, %p160
      %p162 = pneg %p161
      // Predicated region
      $region9: #{tpu_custom_call.1} parent=5 // pred_check
        _
      $region10: #{tpu_custom_call.1} parent=5 // pred_check_branch
        %164 = sbr.rel (%p161) target = $region12
      $region11: #{tpu_custom_call.1} parent=5 // pred_region
        %s165 = ssub.s32 %s15, 1
        // Predicated region
        $region13: #{tpu_custom_call.1} parent=11 // pred_check
          %p166 = pneg %p62
        $region14: #{tpu_custom_call.1} parent=11 // pred_check_branch
          %168 = sbr.rel (%p166) target = $region16
        $region15: #{tpu_custom_call.1} parent=11 // pred_region
          _
        $region16: #{tpu_custom_call.1} parent=11 // pred_fallthru
          _
        // Predicated region
        $region17: #{tpu_custom_call.1} parent=11 // pred_check
          %p169 = pneg %p83
        $region18: #{tpu_custom_call.1} parent=11 // pred_check_branch
          %171 = sbr.rel (%p169) target = $region20
        $region19: #{tpu_custom_call.1} parent=11 // pred_region
          _
        $region20: #{tpu_custom_call.1} parent=11 // pred_fallthru
          _
        // Predicated region
        $region21: #{tpu_custom_call.1} parent=11 // pred_check
          %p172 = pneg %p104
        $region22: #{tpu_custom_call.1} parent=11 // pred_check_branch
          %174 = sbr.rel (%p172) target = $region24
        $region23: #{tpu_custom_call.1} parent=11 // pred_region
          %s176 = ssub.s32 4096, 4096
          %177 = vsyncadd [#allocation3], %s176
          %s178 = sshll.u32 [#allocation2], 4
          %s179 = int_to_ptr.vmem [resolvable:$true] %s178
          %184 = dma.hbm_to_vmem [thread:$0]  %s3, 4096, %s179, [#allocation3], 128, 128, 8
        $region24: #{tpu_custom_call.1} parent=11 // pred_fallthru
          _
        // Predicated region
        $region25: #{tpu_custom_call.1} parent=11 // pred_check
          %p185 = pneg %p125
        $region26: #{tpu_custom_call.1} parent=11 // pred_check_branch
          %187 = sbr.rel (%p185) target = $region28
        $region27: #{tpu_custom_call.1} parent=11 // pred_region
          _
        $region28: #{tpu_custom_call.1} parent=11 // pred_fallthru
          _
      $region12: #{tpu_custom_call.1} parent=5 // pred_fallthru
        _
      %p188 = scmp.lt.s32.totalorder %s15, 2
      // Predicated region
      $region29: #{tpu_custom_call.1} parent=5 // pred_check
        %p189 = pneg %p188
      $region30: #{tpu_custom_call.1} parent=5 // pred_check_branch
        %191 = sbr.rel (%p189) target = $region32
      $region31: #{tpu_custom_call.1} parent=5 // pred_region
        // Predicated region
        $region33: #{tpu_custom_call.1} parent=31 // pred_check
          %p192 = pneg %p35
        $region34: #{tpu_custom_call.1} parent=31 // pred_check_branch
          %194 = sbr.rel (%p192) target = $region36
        $region35: #{tpu_custom_call.1} parent=31 // pred_region
          %s195 = smul.u32 16, %s15
          %p196 = scmp.lt.s32.totalorder %s195, 31
          %s197 = scalar_select %p196, %s195, 31
          %s198 = smul.addr %s197, 4
          %s199 = scalar_lea.vmem %s0, %s198
          %s200 = smul.u32 16, %s15
        $region36: #{tpu_custom_call.1} parent=31 // pred_fallthru
          _
      $region32: #{tpu_custom_call.1} parent=5 // pred_fallthru
        _
      %p201 = scmp.le.s32.totalorder 1, %s15
      %p202 = scmp.lt.s32.totalorder %s15, 3
      %p203 = pnand %p201, %p202
      %p204 = pneg %p203
      // Predicated region
      $region37: #{tpu_custom_call.1} parent=5 // pred_check
        _
      $region38: #{tpu_custom_call.1} parent=5 // pred_check_branch
        %206 = sbr.rel (%p203) target = $region40
      $region39: #{tpu_custom_call.1} parent=5 // pred_region
        %s207 = ssub.s32 %s15, 1
        // Predicated region
        $region41: #{tpu_custom_call.1} parent=39 // pred_check
          %p208 = pneg %p104
        $region42: #{tpu_custom_call.1} parent=39 // pred_check_branch
          %210 = sbr.rel (%p208) target = $region44
        $region43: #{tpu_custom_call.1} parent=39 // pred_region
          %211 = dma.done [#allocation3], 4096
        $region44: #{tpu_custom_call.1} parent=39 // pred_fallthru
          _
        %s212 = smul.u32 16, %s20
        %p213 = scmp.lt.s32.totalorder %s212, 31
        %s214 = scalar_select %p213, %s212, 31
        %s215 = smul.addr %s214, 4
        %s216 = scalar_lea.vmem %s0, %s215
        %p217 = pneg %p41
        %p218 = pneg %p38
        %p219 = pneg %p62
        %p220 = pneg %p59
        %p221 = pneg %p83
        %p222 = pneg %p80
        %p223 = pneg %p104
        %p224 = pneg %p101
        %p225 = pneg %p125
        %p226 = pneg %p122
        %p227 = pneg %p151
        %p228 = pneg %p148
        %s229 = sand.u32 %s138, 1
        %s230 = scalar_lea.sflag [#allocation4], %s229
        %s231 = sand.u32 %s138, 1
        %s232 = smul.addr %s231, 256
        %s233 = scalar_lea.vmem [#allocation5], %s232
        %s234 = smul.u32 16, %s20
        %p235 = scmp.lt.s32.totalorder %s234, 31
        %s236 = scalar_select %p235, %s234, 31
        %s237 = smul.addr %s236, 4
        %s238 = scalar_lea.vmem %s0, %s237
        %s239 = smul.u32 16, %s20
        %s240 = smul.u32 16, %s20
        %v242 = vld [vmem:[%s238] sm:$0xf]
        %v243 = vld [vmem:[%s238 + $0x4] sm:$0xf]
        %v244 = vld [vmem:[%s238 + $0x8] sm:$0xf]
        %v245 = vld [vmem:[%s238 + $0xc] sm:$0xf]
        %v246 = vld [vmem:[%s238 + $0x10] sm:$0xf]
        %v247 = vld [vmem:[%s238 + $0x14] sm:$0xf]
        %v248 = vld [vmem:[%s238 + $0x18] sm:$0xf]
        %v249 = vld [vmem:[%s238 + $0x1c] sm:$0xf]
        %v250 = vld [vmem:[%s238 + $0x20] sm:$0xf]
        %v251 = vld [vmem:[%s238 + $0x24] sm:$0xf]
        %v252 = vld [vmem:[%s238 + $0x28] sm:$0xf]
        %v253 = vld [vmem:[%s238 + $0x2c] sm:$0xf]
        %v254 = vld [vmem:[%s238 + $0x30] sm:$0xf]
        %v255 = vld [vmem:[%s238 + $0x34] sm:$0xf]
        %v256 = vld [vmem:[%s238 + $0x38] sm:$0xf]
        %v257 = vld [vmem:[%s238 + $0x3c] sm:$0xf]
        %v258 = vld [vmem:[%s1] sm:$0xff]
        %v259 = vld [vmem:[%s1 + $0x8] sm:$0xff]
        %v260 = vld [vmem:[%s1 + $0x10] sm:$0xff]
        %v261 = vld [vmem:[%s1 + $0x18] sm:$0xff]
        %v262 = vld [vmem:[%s1 + $0x20] sm:$0xff]
        %v263 = vld [vmem:[%s1 + $0x28] sm:$0xff]
        %v264 = vld [vmem:[%s1 + $0x30] sm:$0xff]
        %v265 = vld [vmem:[%s1 + $0x38] sm:$0xff]
        %v266 = vld [vmem:[%s2] sm:$0x3]
        %v268 = vlaneseq
        %v269 = vshrl.u32 %v268, 7
        %v270 = vsub.s32 0, %v269
        %v271 = vrot.slane %v266, %v270
        %v272 = vlaneseq
        %v273 = vshrl.u32 %v272, 7
        %v274 = vsub.s32 1, %v273
        %v275 = vrot.slane %v266, %v274
        %v294 = vunpack.c.l.b16 %v242
        %v295 = vunpack.c.l.b16 %v243
        %v296 = vunpack.c.l.b16 %v244
        %v297 = vunpack.c.l.b16 %v245
        %v298 = vunpack.c.l.b16 %v246
        %v299 = vunpack.c.l.b16 %v247
        %v300 = vunpack.c.l.b16 %v248
        %v301 = vunpack.c.l.b16 %v249
        %v302 = vunpack.c.l.b16 %v250
        %v303 = vunpack.c.l.b16 %v251
        %v304 = vunpack.c.l.b16 %v252
        %v305 = vunpack.c.l.b16 %v253
        %v306 = vunpack.c.l.b16 %v254
        %v307 = vunpack.c.l.b16 %v255
        %v308 = vunpack.c.l.b16 %v256
        %v309 = vunpack.c.l.b16 %v257
        %v310 = vpack.c.b16 %v295, %v294
        %v311 = vpack.c.b16 %v297, %v296
        %v312 = vpack.c.b16 %v299, %v298
        %v313 = vpack.c.b16 %v301, %v300
        %v314 = vpack.c.b16 %v303, %v302
        %v315 = vpack.c.b16 %v305, %v304
        %v316 = vpack.c.b16 %v307, %v306
        %v317 = vpack.c.b16 %v309, %v308
        %v326 = vunpack.c.l.b16 %v258
        %v327 = vunpack.c.h.b16 %v258
        %v328 = vunpack.c.l.b16 %v259
        %v329 = vunpack.c.h.b16 %v259
        %v330 = vunpack.c.l.b16 %v260
        %v331 = vunpack.c.h.b16 %v260
        %v332 = vunpack.c.l.b16 %v261
        %v333 = vunpack.c.h.b16 %v261
        %v334 = vunpack.c.l.b16 %v262
        %v335 = vunpack.c.h.b16 %v262
        %v336 = vunpack.c.l.b16 %v263
        %v337 = vunpack.c.h.b16 %v263
        %v338 = vunpack.c.l.b16 %v264
        %v339 = vunpack.c.h.b16 %v264
        %v340 = vunpack.c.l.b16 %v265
        %v341 = vunpack.c.h.b16 %v265
        %v342 = vpack.c.b16 %v328, %v326
        %v343 = vpack.c.b16 %v329, %v327
        %v344 = vpack.c.b16 %v332, %v330
        %v345 = vpack.c.b16 %v333, %v331
        %v346 = vpack.c.b16 %v336, %v334
        %v347 = vpack.c.b16 %v337, %v335
        %v348 = vpack.c.b16 %v340, %v338
        %v349 = vpack.c.b16 %v341, %v339
        %vm358 = vcmask 523264
        %v360 = vsel %vm358, %v310, 0
        %v363 = vsel %vm358, %v311, 0
        %v366 = vsel %vm358, %v312, 0
        %v369 = vsel %vm358, %v313, 0
        %v372 = vsel %vm358, %v314, 0
        %v375 = vsel %vm358, %v315, 0
        %v378 = vsel %vm358, %v316, 0
        %v381 = vsel %vm358, %v317, 0
        %383 = vmatprep.subr.bf16.mxu0 0
        %384 = vmatpush1.bf16.msra.mxu0 0
        %385 = vmatprep.subr.bf16.mxu0 0
        %386 = vmatpush1.bf16.msra.mxu0 0
        %387 = vmatprep.subr.bf16.mxu0 0
        %388 = vmatpush1.bf16.msra.mxu0 0
        %389 = vmatprep.subr.bf16.mxu0 0
        %390 = vmatpush1.bf16.msra.mxu0 0
        %391 = vmatprep.subr.bf16.mxu0 %v349
        %392 = vmatpush1.bf16.msra.mxu0 %v348
        %393 = vmatprep.subr.bf16.mxu0 %v347
        %394 = vmatpush1.bf16.msra.mxu0 %v346
        %395 = vmatprep.subr.bf16.mxu0 %v345
        %396 = vmatpush1.bf16.msra.mxu0 %v344
        %397 = vmatprep.subr.bf16.mxu0 %v343
        %398 = vmatpush1.bf16.msra.mxu0 %v342
        %399 = vmatprep.subr.bf16.mxu0 0
        %400 = vmatpush2.bf16.msra.mxu0 0
        %401 = vmatprep.subr.bf16.mxu0 0
        %402 = vmatpush2.bf16.msra.mxu0 0
        %403 = vmatprep.subr.bf16.mxu0 0
        %404 = vmatpush2.bf16.msra.mxu0 0
        %405 = vmatprep.subr.bf16.mxu0 0
        %406 = vmatpush2.bf16.msra.mxu0 0
        %407 = vmatprep.subr.bf16.mxu0 0
        %408 = vmatpush2.bf16.msra.mxu0 0
        %409 = vmatprep.subr.bf16.mxu0 0
        %410 = vmatpush2.bf16.msra.mxu0 0
        %411 = vmatprep.subr.bf16.mxu0 0
        %412 = vmatpush2.bf16.msra.mxu0 0
        %413 = vmatprep.subr.bf16.mxu0 0
        %414 = vmatpush2.bf16.msra.mxu0 0
        %415 = vmatprep.mubr.bf16.mxu0 0
        %416 = vmatmul.mubr.bf16.gmra.mxu0 %v360
        %v417 = vpop.f32.mrf.mxu0
        %v418 = vadd.f32 %v271, %v417
        %v419 = vpop.f32.mrf.mxu0
        %v420 = vadd.f32 %v275, %v419
        %v421 = vpop.f32.mrf.mxu0
        %v422 = vadd.f32 %v271, %v421
        %v423 = vpop.f32.mrf.mxu0
        %v424 = vadd.f32 %v275, %v423
        %425 = vmatprep.mubr.bf16.mxu0 0
        %426 = vmatmul.mubr.bf16.gmra.mxu0 %v363
        %v427 = vpop.f32.mrf.mxu0
        %v428 = vadd.f32 %v271, %v427
        %v429 = vpop.f32.mrf.mxu0
        %v430 = vadd.f32 %v275, %v429
        %v431 = vpop.f32.mrf.mxu0
        %v432 = vadd.f32 %v271, %v431
        %v433 = vpop.f32.mrf.mxu0
        %v434 = vadd.f32 %v275, %v433
        %435 = vmatprep.mubr.bf16.mxu0 0
        %436 = vmatmul.mubr.bf16.gmra.mxu0 %v366
        %v437 = vpop.f32.mrf.mxu0
        %v438 = vadd.f32 %v271, %v437
        %v439 = vpop.f32.mrf.mxu0
        %v440 = vadd.f32 %v275, %v439
        %v441 = vpop.f32.mrf.mxu0
        %v442 = vadd.f32 %v271, %v441
        %v443 = vpop.f32.mrf.mxu0
        %v444 = vadd.f32 %v275, %v443
        %445 = vmatprep.mubr.bf16.mxu0 0
        %446 = vmatmul.mubr.bf16.gmra.mxu0 %v369
        %v447 = vpop.f32.mrf.mxu0
        %v448 = vadd.f32 %v271, %v447
        %v449 = vpop.f32.mrf.mxu0
        %v450 = vadd.f32 %v275, %v449
        %v451 = vpop.f32.mrf.mxu0
        %v452 = vadd.f32 %v271, %v451
        %v453 = vpop.f32.mrf.mxu0
        %v454 = vadd.f32 %v275, %v453
        %455 = vmatprep.mubr.bf16.mxu0 0
        %456 = vmatmul.mubr.bf16.gmra.mxu0 %v372
        %v457 = vpop.f32.mrf.mxu0
        %v458 = vadd.f32 %v271, %v457
        %v459 = vpop.f32.mrf.mxu0
        %v460 = vadd.f32 %v275, %v459
        %v461 = vpop.f32.mrf.mxu0
        %v462 = vadd.f32 %v271, %v461
        %v463 = vpop.f32.mrf.mxu0
        %v464 = vadd.f32 %v275, %v463
        %465 = vmatprep.mubr.bf16.mxu0 0
        %466 = vmatmul.mubr.bf16.gmra.mxu0 %v375
        %v467 = vpop.f32.mrf.mxu0
        %v468 = vadd.f32 %v271, %v467
        %v469 = vpop.f32.mrf.mxu0
        %v470 = vadd.f32 %v275, %v469
        %v471 = vpop.f32.mrf.mxu0
        %v472 = vadd.f32 %v271, %v471
        %v473 = vpop.f32.mrf.mxu0
        %v474 = vadd.f32 %v275, %v473
        %475 = vmatprep.mubr.bf16.mxu0 0
        %476 = vmatmul.mubr.bf16.gmra.mxu0 %v378
        %v477 = vpop.f32.mrf.mxu0
        %v478 = vadd.f32 %v271, %v477
        %v479 = vpop.f32.mrf.mxu0
        %v480 = vadd.f32 %v275, %v479
        %v481 = vpop.f32.mrf.mxu0
        %v482 = vadd.f32 %v271, %v481
        %v483 = vpop.f32.mrf.mxu0
        %v484 = vadd.f32 %v275, %v483
        %485 = vmatprep.mubr.bf16.mxu0 0
        %486 = vmatmul.mubr.bf16.gmra.mxu0 %v381
        %v487 = vpop.f32.mrf.mxu0
        %v488 = vadd.f32 %v271, %v487
        %v489 = vpop.f32.mrf.mxu0
        %v490 = vadd.f32 %v275, %v489
        %v491 = vpop.f32.mrf.mxu0
        %v492 = vadd.f32 %v271, %v491
        %v493 = vpop.f32.mrf.mxu0
        %v494 = vadd.f32 %v275, %v493
        %495 = vdwg.mxu0
        %v496 = vmul.f32 %v418, 0.01
        %v497 = vmul.f32 %v420, 0.01
        %v498 = vmul.f32 %v422, 0.01
        %v499 = vmul.f32 %v424, 0.01
        %v500 = vmul.f32 %v428, 0.01
        %v501 = vmul.f32 %v430, 0.01
        %v502 = vmul.f32 %v432, 0.01
        %v503 = vmul.f32 %v434, 0.01
        %v504 = vmul.f32 %v438, 0.01
        %v505 = vmul.f32 %v440, 0.01
        %v506 = vmul.f32 %v442, 0.01
        %v507 = vmul.f32 %v444, 0.01
        %v508 = vmul.f32 %v448, 0.01
        %v509 = vmul.f32 %v450, 0.01
        %v510 = vmul.f32 %v452, 0.01
        %v511 = vmul.f32 %v454, 0.01
        %v512 = vmul.f32 %v458, 0.01
        %v513 = vmul.f32 %v460, 0.01
        %v514 = vmul.f32 %v462, 0.01
        %v515 = vmul.f32 %v464, 0.01
        %v516 = vmul.f32 %v468, 0.01
        %v517 = vmul.f32 %v470, 0.01
        %v518 = vmul.f32 %v472, 0.01
        %v519 = vmul.f32 %v474, 0.01
        %v520 = vmul.f32 %v478, 0.01
        %v521 = vmul.f32 %v480, 0.01
        %v522 = vmul.f32 %v482, 0.01
        %v523 = vmul.f32 %v484, 0.01
        %v524 = vmul.f32 %v488, 0.01
        %v525 = vmul.f32 %v490, 0.01
        %v526 = vmul.f32 %v492, 0.01
        %v527 = vmul.f32 %v494, 0.01
        %v528 = vmax.f32 %v418, %v496
        %v529 = vmax.f32 %v420, %v497
        %v530 = vmax.f32 %v422, %v498
        %v531 = vmax.f32 %v424, %v499
        %v532 = vmax.f32 %v428, %v500
        %v533 = vmax.f32 %v430, %v501
        %v534 = vmax.f32 %v432, %v502
        %v535 = vmax.f32 %v434, %v503
        %v536 = vmax.f32 %v438, %v504
        %v537 = vmax.f32 %v440, %v505
        %v538 = vmax.f32 %v442, %v506
        %v539 = vmax.f32 %v444, %v507
        %v540 = vmax.f32 %v448, %v508
        %v541 = vmax.f32 %v450, %v509
        %v542 = vmax.f32 %v452, %v510
        %v543 = vmax.f32 %v454, %v511
        %v544 = vmax.f32 %v458, %v512
        %v545 = vmax.f32 %v460, %v513
        %v546 = vmax.f32 %v462, %v514
        %v547 = vmax.f32 %v464, %v515
        %v548 = vmax.f32 %v468, %v516
        %v549 = vmax.f32 %v470, %v517
        %v550 = vmax.f32 %v472, %v518
        %v551 = vmax.f32 %v474, %v519
        %v552 = vmax.f32 %v478, %v520
        %v553 = vmax.f32 %v480, %v521
        %v554 = vmax.f32 %v482, %v522
        %v555 = vmax.f32 %v484, %v523
        %v556 = vmax.f32 %v488, %v524
        %v557 = vmax.f32 %v490, %v525
        %v558 = vmax.f32 %v492, %v526
        %v559 = vmax.f32 %v494, %v527
        %v560 = vpack.c.bf16 %v530, %v528
        %v561 = vpack.c.bf16 %v531, %v529
        %v562 = vpack.c.bf16 %v534, %v532
        %v563 = vpack.c.bf16 %v535, %v533
        %v564 = vpack.c.bf16 %v538, %v536
        %v565 = vpack.c.bf16 %v539, %v537
        %v566 = vpack.c.bf16 %v542, %v540
        %v567 = vpack.c.bf16 %v543, %v541
        %v568 = vpack.c.bf16 %v546, %v544
        %v569 = vpack.c.bf16 %v547, %v545
        %v570 = vpack.c.bf16 %v550, %v548
        %v571 = vpack.c.bf16 %v551, %v549
        %v572 = vpack.c.bf16 %v554, %v552
        %v573 = vpack.c.bf16 %v555, %v553
        %v574 = vpack.c.bf16 %v558, %v556
        %v575 = vpack.c.bf16 %v559, %v557
        %v576 = vld [vmem:[#allocation2] sm:$0xff]
        %v577 = vld [vmem:[#allocation2 + $0x8] sm:$0xff]
        %v578 = vld [vmem:[#allocation2 + $0x10] sm:$0xff]
        %v579 = vld [vmem:[#allocation2 + $0x18] sm:$0xff]
        %v580 = vld [vmem:[#allocation2 + $0x20] sm:$0xff]
        %v581 = vld [vmem:[#allocation2 + $0x28] sm:$0xff]
        %v582 = vld [vmem:[#allocation2 + $0x30] sm:$0xff]
        %v583 = vld [vmem:[#allocation2 + $0x38] sm:$0xff]
        %v584 = vld [vmem:[#allocation2 + $0x40] sm:$0xff]
        %v585 = vld [vmem:[#allocation2 + $0x48] sm:$0xff]
        %v586 = vld [vmem:[#allocation2 + $0x50] sm:$0xff]
        %v587 = vld [vmem:[#allocation2 + $0x58] sm:$0xff]
        %v588 = vld [vmem:[#allocation2 + $0x60] sm:$0xff]
        %v589 = vld [vmem:[#allocation2 + $0x68] sm:$0xff]
        %v590 = vld [vmem:[#allocation2 + $0x70] sm:$0xff]
        %v591 = vld [vmem:[#allocation2 + $0x78] sm:$0xff]
        %v592 = vld [vmem:[#allocation2 + $0x80] sm:$0xff]
        %v593 = vld [vmem:[#allocation2 + $0x88] sm:$0xff]
        %v594 = vld [vmem:[#allocation2 + $0x90] sm:$0xff]
        %v595 = vld [vmem:[#allocation2 + $0x98] sm:$0xff]
        %v596 = vld [vmem:[#allocation2 + $0xa0] sm:$0xff]
        %v597 = vld [vmem:[#allocation2 + $0xa8] sm:$0xff]
        %v598 = vld [vmem:[#allocation2 + $0xb0] sm:$0xff]
        %v599 = vld [vmem:[#allocation2 + $0xb8] sm:$0xff]
        %v600 = vld [vmem:[#allocation2 + $0xc0] sm:$0xff]
        %v601 = vld [vmem:[#allocation2 + $0xc8] sm:$0xff]
        %v602 = vld [vmem:[#allocation2 + $0xd0] sm:$0xff]
        %v603 = vld [vmem:[#allocation2 + $0xd8] sm:$0xff]
        %v604 = vld [vmem:[#allocation2 + $0xe0] sm:$0xff]
        %v605 = vld [vmem:[#allocation2 + $0xe8] sm:$0xff]
        %v606 = vld [vmem:[#allocation2 + $0xf0] sm:$0xff]
        %v607 = vld [vmem:[#allocation2 + $0xf8] sm:$0xff]
        %v608 = vld [vmem:[%s4] sm:$0x3]
        %v610 = vlaneseq
        %v611 = vshrl.u32 %v610, 7
        %v612 = vsub.s32 0, %v611
        %v613 = vrot.slane %v608, %v612
        %v614 = vlaneseq
        %v615 = vshrl.u32 %v614, 7
        %v616 = vsub.s32 1, %v615
        %v617 = vrot.slane %v608, %v616
        %v652 = vunpack.c.l.b16 %v576
        %v653 = vunpack.c.h.b16 %v576
        %v654 = vunpack.c.l.b16 %v577
        %v655 = vunpack.c.h.b16 %v577
        %v656 = vunpack.c.l.b16 %v578
        %v657 = vunpack.c.h.b16 %v578
        %v658 = vunpack.c.l.b16 %v579
        %v659 = vunpack.c.h.b16 %v579
        %v660 = vunpack.c.l.b16 %v580
        %v661 = vunpack.c.h.b16 %v580
        %v662 = vunpack.c.l.b16 %v581
        %v663 = vunpack.c.h.b16 %v581
        %v664 = vunpack.c.l.b16 %v582
        %v665 = vunpack.c.h.b16 %v582
        %v666 = vunpack.c.l.b16 %v583
        %v667 = vunpack.c.h.b16 %v583
        %v668 = vunpack.c.l.b16 %v584
        %v669 = vunpack.c.h.b16 %v584
        %v670 = vunpack.c.l.b16 %v585
        %v671 = vunpack.c.h.b16 %v585
        %v672 = vunpack.c.l.b16 %v586
        %v673 = vunpack.c.h.b16 %v586
        %v674 = vunpack.c.l.b16 %v587
        %v675 = vunpack.c.h.b16 %v587
        %v676 = vunpack.c.l.b16 %v588
        %v677 = vunpack.c.h.b16 %v588
        %v678 = vunpack.c.l.b16 %v589
        %v679 = vunpack.c.h.b16 %v589
        %v680 = vunpack.c.l.b16 %v590
        %v681 = vunpack.c.h.b16 %v590
        %v682 = vunpack.c.l.b16 %v591
        %v683 = vunpack.c.h.b16 %v591
        %v684 = vunpack.c.l.b16 %v592
        %v685 = vunpack.c.h.b16 %v592
        %v686 = vunpack.c.l.b16 %v593
        %v687 = vunpack.c.h.b16 %v593
        %v688 = vunpack.c.l.b16 %v594
        %v689 = vunpack.c.h.b16 %v594
        %v690 = vunpack.c.l.b16 %v595
        %v691 = vunpack.c.h.b16 %v595
        %v692 = vunpack.c.l.b16 %v596
        %v693 = vunpack.c.h.b16 %v596
        %v694 = vunpack.c.l.b16 %v597
        %v695 = vunpack.c.h.b16 %v597
        %v696 = vunpack.c.l.b16 %v598
        %v697 = vunpack.c.h.b16 %v598
        %v698 = vunpack.c.l.b16 %v599
        %v699 = vunpack.c.h.b16 %v599
        %v700 = vunpack.c.l.b16 %v600
        %v701 = vunpack.c.h.b16 %v600
        %v702 = vunpack.c.l.b16 %v601
        %v703 = vunpack.c.h.b16 %v601
        %v704 = vunpack.c.l.b16 %v602
        %v705 = vunpack.c.h.b16 %v602
        %v706 = vunpack.c.l.b16 %v603
        %v707 = vunpack.c.h.b16 %v603
        %v708 = vunpack.c.l.b16 %v604
        %v709 = vunpack.c.h.b16 %v604
        %v710 = vunpack.c.l.b16 %v605
        %v711 = vunpack.c.h.b16 %v605
        %v712 = vunpack.c.l.b16 %v606
        %v713 = vunpack.c.h.b16 %v606
        %v714 = vunpack.c.l.b16 %v607
        %v715 = vunpack.c.h.b16 %v607
        %v716 = vpack.c.b16 %v654, %v652
        %v717 = vpack.c.b16 %v655, %v653
        %v718 = vpack.c.b16 %v658, %v656
        %v719 = vpack.c.b16 %v659, %v657
        %v720 = vpack.c.b16 %v662, %v660
        %v721 = vpack.c.b16 %v663, %v661
        %v722 = vpack.c.b16 %v666, %v664
        %v723 = vpack.c.b16 %v667, %v665
        %v724 = vpack.c.b16 %v670, %v668
        %v725 = vpack.c.b16 %v671, %v669
        %v726 = vpack.c.b16 %v674, %v672
        %v727 = vpack.c.b16 %v675, %v673
        %v728 = vpack.c.b16 %v678, %v676
        %v729 = vpack.c.b16 %v679, %v677
        %v730 = vpack.c.b16 %v682, %v680
        %v731 = vpack.c.b16 %v683, %v681
        %v732 = vpack.c.b16 %v686, %v684
        %v733 = vpack.c.b16 %v687, %v685
        %v734 = vpack.c.b16 %v690, %v688
        %v735 = vpack.c.b16 %v691, %v689
        %v736 = vpack.c.b16 %v694, %v692
        %v737 = vpack.c.b16 %v695, %v693
        %v738 = vpack.c.b16 %v698, %v696
        %v739 = vpack.c.b16 %v699, %v697
        %v740 = vpack.c.b16 %v702, %v700
        %v741 = vpack.c.b16 %v703, %v701
        %v742 = vpack.c.b16 %v706, %v704
        %v743 = vpack.c.b16 %v707, %v705
        %v744 = vpack.c.b16 %v710, %v708
        %v745 = vpack.c.b16 %v711, %v709
        %v746 = vpack.c.b16 %v714, %v712
        %v747 = vpack.c.b16 %v715, %v713
        %780 = vmatprep.subr.bf16.mxu0 %v731
        %781 = vmatpush1.bf16.msra.mxu0 %v730
        %782 = vmatprep.subr.bf16.mxu0 %v729
        %783 = vmatpush1.bf16.msra.mxu0 %v728
        %784 = vmatprep.subr.bf16.mxu0 %v727
        %785 = vmatpush1.bf16.msra.mxu0 %v726
        %786 = vmatprep.subr.bf16.mxu0 %v725
        %787 = vmatpush1.bf16.msra.mxu0 %v724
        %788 = vmatprep.subr.bf16.mxu0 %v723
        %789 = vmatpush1.bf16.msra.mxu0 %v722
        %790 = vmatprep.subr.bf16.mxu0 %v721
        %791 = vmatpush1.bf16.msra.mxu0 %v720
        %792 = vmatprep.subr.bf16.mxu0 %v719
        %793 = vmatpush1.bf16.msra.mxu0 %v718
        %794 = vmatprep.subr.bf16.mxu0 %v717
        %795 = vmatpush1.bf16.msra.mxu0 %v716
        %796 = vmatprep.subr.bf16.mxu0 %v747
        %797 = vmatpush2.bf16.msra.mxu0 %v746
        %798 = vmatprep.subr.bf16.mxu0 %v745
        %799 = vmatpush2.bf16.msra.mxu0 %v744
        %800 = vmatprep.subr.bf16.mxu0 %v743
        %801 = vmatpush2.bf16.msra.mxu0 %v742
        %802 = vmatprep.subr.bf16.mxu0 %v741
        %803 = vmatpush2.bf16.msra.mxu0 %v740
        %804 = vmatprep.subr.bf16.mxu0 %v739
        %805 = vmatpush2.bf16.msra.mxu0 %v738
        %806 = vmatprep.subr.bf16.mxu0 %v737
        %807 = vmatpush2.bf16.msra.mxu0 %v736
        %808 = vmatprep.subr.bf16.mxu0 %v735
        %809 = vmatpush2.bf16.msra.mxu0 %v734
        %810 = vmatprep.subr.bf16.mxu0 %v733
        %811 = vmatpush2.bf16.msra.mxu0 %v732
        %812 = vmatprep.mubr.bf16.mxu0 %v561
        %813 = vmatmul.mubr.bf16.gmra.mxu0 %v560
        %v814 = vpop.f32.mrf.mxu0
        %v815 = vadd.f32 %v613, %v814
        %v816 = vpop.f32.mrf.mxu0
        %v817 = vadd.f32 %v617, %v816
        %v818 = vpop.f32.mrf.mxu0
        %v819 = vadd.f32 %v613, %v818
        %v820 = vpop.f32.mrf.mxu0
        %v821 = vadd.f32 %v617, %v820
        %822 = vmatprep.mubr.bf16.mxu0 %v563
        %823 = vmatmul.mubr.bf16.gmra.mxu0 %v562
        %v824 = vpop.f32.mrf.mxu0
        %v825 = vadd.f32 %v613, %v824
        %v826 = vpop.f32.mrf.mxu0
        %v827 = vadd.f32 %v617, %v826
        %v828 = vpop.f32.mrf.mxu0
        %v829 = vadd.f32 %v613, %v828
        %v830 = vpop.f32.mrf.mxu0
        %v831 = vadd.f32 %v617, %v830
        %832 = vmatprep.mubr.bf16.mxu0 %v565
        %833 = vmatmul.mubr.bf16.gmra.mxu0 %v564
        %v834 = vpop.f32.mrf.mxu0
        %v835 = vadd.f32 %v613, %v834
        %v836 = vpop.f32.mrf.mxu0
        %v837 = vadd.f32 %v617, %v836
        %v838 = vpop.f32.mrf.mxu0
        %v839 = vadd.f32 %v613, %v838
        %v840 = vpop.f32.mrf.mxu0
        %v841 = vadd.f32 %v617, %v840
        %842 = vmatprep.mubr.bf16.mxu0 %v567
        %843 = vmatmul.mubr.bf16.gmra.mxu0 %v566
        %v844 = vpop.f32.mrf.mxu0
        %v845 = vadd.f32 %v613, %v844
        %v846 = vpop.f32.mrf.mxu0
        %v847 = vadd.f32 %v617, %v846
        %v848 = vpop.f32.mrf.mxu0
        %v849 = vadd.f32 %v613, %v848
        %v850 = vpop.f32.mrf.mxu0
        %v851 = vadd.f32 %v617, %v850
        %852 = vmatprep.mubr.bf16.mxu0 %v569
        %853 = vmatmul.mubr.bf16.gmra.mxu0 %v568
        %v854 = vpop.f32.mrf.mxu0
        %v855 = vadd.f32 %v613, %v854
        %v856 = vpop.f32.mrf.mxu0
        %v857 = vadd.f32 %v617, %v856
        %v858 = vpop.f32.mrf.mxu0
        %v859 = vadd.f32 %v613, %v858
        %v860 = vpop.f32.mrf.mxu0
        %v861 = vadd.f32 %v617, %v860
        %862 = vmatprep.mubr.bf16.mxu0 %v571
        %863 = vmatmul.mubr.bf16.gmra.mxu0 %v570
        %v864 = vpop.f32.mrf.mxu0
        %v865 = vadd.f32 %v613, %v864
        %v866 = vpop.f32.mrf.mxu0
        %v867 = vadd.f32 %v617, %v866
        %v868 = vpop.f32.mrf.mxu0
        %v869 = vadd.f32 %v613, %v868
        %v870 = vpop.f32.mrf.mxu0
        %v871 = vadd.f32 %v617, %v870
        %872 = vmatprep.mubr.bf16.mxu0 %v573
        %873 = vmatmul.mubr.bf16.gmra.mxu0 %v572
        %v874 = vpop.f32.mrf.mxu0
        %v875 = vadd.f32 %v613, %v874
        %v876 = vpop.f32.mrf.mxu0
        %v877 = vadd.f32 %v617, %v876
        %v878 = vpop.f32.mrf.mxu0
        %v879 = vadd.f32 %v613, %v878
        %v880 = vpop.f32.mrf.mxu0
        %v881 = vadd.f32 %v617, %v880
        %882 = vmatprep.mubr.bf16.mxu0 %v575
        %883 = vmatmul.mubr.bf16.gmra.mxu0 %v574
        %v884 = vpop.f32.mrf.mxu0
        %v885 = vadd.f32 %v613, %v884
        %v886 = vpop.f32.mrf.mxu0
        %v887 = vadd.f32 %v617, %v886
        %v888 = vpop.f32.mrf.mxu0
        %v889 = vadd.f32 %v613, %v888
        %v890 = vpop.f32.mrf.mxu0
        %v891 = vadd.f32 %v617, %v890
        %892 = vdwg.mxu0
        %v893 = vtanh.pop %v815
        %v894 = vtanh.pop %v817
        %v895 = vtanh.pop %v819
        %v896 = vtanh.pop %v821
        %v897 = vtanh.pop %v825
        %v898 = vtanh.pop %v827
        %v899 = vtanh.pop %v829
        %v900 = vtanh.pop %v831
        %v901 = vtanh.pop %v835
        %v902 = vtanh.pop %v837
        %v903 = vtanh.pop %v839
        %v904 = vtanh.pop %v841
        %v905 = vtanh.pop %v845
        %v906 = vtanh.pop %v847
        %v907 = vtanh.pop %v849
        %v908 = vtanh.pop %v851
        %v909 = vtanh.pop %v855
        %v910 = vtanh.pop %v857
        %v911 = vtanh.pop %v859
        %v912 = vtanh.pop %v861
        %v913 = vtanh.pop %v865
        %v914 = vtanh.pop %v867
        %v915 = vtanh.pop %v869
        %v916 = vtanh.pop %v871
        %v917 = vtanh.pop %v875
        %v918 = vtanh.pop %v877
        %v919 = vtanh.pop %v879
        %v920 = vtanh.pop %v881
        %v921 = vtanh.pop %v885
        %v922 = vtanh.pop %v887
        %v923 = vtanh.pop %v889
        %v924 = vtanh.pop %v891
        %925 = vst [vmem:[%s233] sm:$0xff] %v893
        %926 = vst [vmem:[%s233 + $0x8] sm:$0xff] %v894
        %927 = vst [vmem:[%s233 + $0x10] sm:$0xff] %v895
        %928 = vst [vmem:[%s233 + $0x18] sm:$0xff] %v896
        %929 = vst [vmem:[%s233 + $0x20] sm:$0xff] %v897
        %930 = vst [vmem:[%s233 + $0x28] sm:$0xff] %v898
        %931 = vst [vmem:[%s233 + $0x30] sm:$0xff] %v899
        %932 = vst [vmem:[%s233 + $0x38] sm:$0xff] %v900
        %933 = vst [vmem:[%s233 + $0x40] sm:$0xff] %v901
        %934 = vst [vmem:[%s233 + $0x48] sm:$0xff] %v902
        %935 = vst [vmem:[%s233 + $0x50] sm:$0xff] %v903
        %936 = vst [vmem:[%s233 + $0x58] sm:$0xff] %v904
        %937 = vst [vmem:[%s233 + $0x60] sm:$0xff] %v905
        %938 = vst [vmem:[%s233 + $0x68] sm:$0xff] %v906
        %939 = vst [vmem:[%s233 + $0x70] sm:$0xff] %v907
        %940 = vst [vmem:[%s233 + $0x78] sm:$0xff] %v908
        %941 = vst [vmem:[%s233 + $0x80] sm:$0xff] %v909
        %942 = vst [vmem:[%s233 + $0x88] sm:$0xff] %v910
        %943 = vst [vmem:[%s233 + $0x90] sm:$0xff] %v911
        %944 = vst [vmem:[%s233 + $0x98] sm:$0xff] %v912
        %945 = vst [vmem:[%s233 + $0xa0] sm:$0xff] %v913
        %946 = vst [vmem:[%s233 + $0xa8] sm:$0xff] %v914
        %947 = vst [vmem:[%s233 + $0xb0] sm:$0xff] %v915
        %948 = vst [vmem:[%s233 + $0xb8] sm:$0xff] %v916
        %949 = vst [vmem:[%s233 + $0xc0] sm:$0xff] %v917
        %950 = vst [vmem:[%s233 + $0xc8] sm:$0xff] %v918
        %951 = vst [vmem:[%s233 + $0xd0] sm:$0xff] %v919
        %952 = vst [vmem:[%s233 + $0xd8] sm:$0xff] %v920
        %953 = vst [vmem:[%s233 + $0xe0] sm:$0xff] %v921
        %954 = vst [vmem:[%s233 + $0xe8] sm:$0xff] %v922
        %955 = vst [vmem:[%s233 + $0xf0] sm:$0xff] %v923
        %956 = vst [vmem:[%s233 + $0xf8] sm:$0xff] %v924
        %s957 = sand.u32 %s138, 1
        %s958 = scalar_lea.sflag [#allocation4], %s957
        %s959 = sand.u32 %s138, 1
        %s960 = smul.addr %s959, 256
        %s961 = scalar_lea.vmem [#allocation5], %s960
        // Predicated region
        $region45: #{tpu_custom_call.1} parent=39 // pred_check
          %p962 = pneg %p148
        $region46: #{tpu_custom_call.1} parent=39 // pred_check_branch
          %964 = sbr.rel (%p962) target = $region48
        $region47: #{tpu_custom_call.1} parent=39 // pred_region
          %s965 = smul.u32 16, %s20
          %s967 = ssub.s32 4096, 4096
          %968 = vsyncadd %s958, %s967
          %s969 = smul.addr %s965, 2
          %s970 = smul.addr %s969, 128
          %s971 = scalar_lea.hbm %s5, %s970
          %s972 = sshll.u32 %s961, 4
          %s973 = int_to_ptr.vmem [resolvable:$true] %s972
          %978 = dma.vmem_to_hbm [thread:$0]  %s973, 4096, %s971, %s958, 256, 256, 16
        $region48: #{tpu_custom_call.1} parent=39 // pred_fallthru
          _
      $region40: #{tpu_custom_call.1} parent=5 // pred_fallthru
        _
      %p979 = scmp.le.s32.totalorder 2, %s15
      // Predicated region
      $region49: #{tpu_custom_call.1} parent=5 // pred_check
        %p980 = pneg %p979
      $region50: #{tpu_custom_call.1} parent=5 // pred_check_branch
        %982 = sbr.rel (%p980) target = $region52
      $region51: #{tpu_custom_call.1} parent=5 // pred_region
        %s983 = ssub.s32 %s15, 2
        // Predicated region
        $region53: #{tpu_custom_call.1} parent=51 // pred_check
          %p984 = pneg %p154
        $region54: #{tpu_custom_call.1} parent=51 // pred_check_branch
          %986 = sbr.rel (%p984) target = $region56
        $region55: #{tpu_custom_call.1} parent=51 // pred_region
          %s987 = sand.u32 %s139, 1
          %s988 = scalar_lea.sflag [#allocation4], %s987
          %s989 = sand.u32 %s139, 1
          %s990 = smul.addr %s989, 256
          %s991 = scalar_lea.vmem [#allocation5], %s990
          %992 = dma.done %s988, 4096
        $region56: #{tpu_custom_call.1} parent=51 // pred_fallthru
          _
      $region52: #{tpu_custom_call.1} parent=5 // pred_fallthru
        _
    $region6: #{tpu_custom_call.1} parent=1 // loop_footer
      %s19 = sadd.s32 1, %s15
    $region7: #{tpu_custom_call.1} parent=1 // loop_footer_branch
      %14 = sbr.rel target = $region3
    $region8: #{tpu_custom_call.1} parent=1 // loop_exit
      _
    %993 = vsyncpa [#allocation3], 1
    %s994 = scalar_lea.sflag [#allocation3], 1
    %995 = vsyncpa %s994, 1
    %996 = vsyncpa [#allocation4], 1
    %s997 = scalar_lea.sflag [#allocation4], 1
    %998 = vsyncpa %s997, 1

</llo_original>
